<compile_context>
chip_gen: v7x
topology: tpu7x:2x2x1
jax: 0.10.0
libtpu: 0.0.40
codegen_flags: <defaults>
</compile_context>

<pallas_src>
import functools

import jax
import jax.numpy as jnp
import numpy as np
from jax.experimental import pallas as pl
from jax.experimental.pallas import tpu as pltpu

_LANE = 128


def _round_up(n, m):
    return ((n + m - 1) // m) * m


def _pick_b_tile(B):
    """Smallest multiple-of-8 batch tile that divides B, so both the x slab
    block (b_tile*C rows) and the packed output block (b_tile rows) satisfy
    the (8,128) tiling rule and large batches get >1 'parallel' grid step
    (v7x megacore).  Falls back to the full batch, which is always legal."""
    for bt in range(8, B + 1, 8):
        if B % bt == 0:
            return bt
    return B


# ----------------------------- Pallas kernel ------------------------------ #
def _attention_kernel(x_ref,       # (rows_block, tile_hw)  streamed x tile
                      sel_ref,     # (b_tile, rows_block)   row->batch gather
                      wfc_ref,     # (rows_block, A)        fc weight, 1/HW folded
                      scale_ref,   # (1, A)                 folded BN scale
                      shift_ref,   # (1, A)                 folded BN shift
                      w_all_ref,   # (A, n_pad)             fused branch weights, 1/T folded
                      b_all_ref,   # (1, n_pad)             fused branch biases, 1/T folded
                      out_ref,     # (b_tile, n_pad)        packed outputs
                      acc_ref,     # scratch (rows_block, 1) f32 pooled sums
                      *, n_sig, n_tot):
    hw_step = pl.program_id(1)

    @pl.when(hw_step == 0)
    def _():
        acc_ref[...] = jnp.zeros_like(acc_ref)

    # Streaming phase: partial spatial sum for this HW tile, accumulated in
    # f32 (x may be bf16 in HBM/VMEM; the per-tile cast is free VALU work,
    # the HBM read is the critical resource).
    xt = x_ref[...].astype(jnp.float32)
    acc_ref[...] += jnp.sum(xt, axis=-1, keepdims=True)

    @pl.when(hw_step == pl.num_programs(1) - 1)
    def _():
        # pooled @ fc : sel gathers each group of C per-channel sums back into
        # its batch row; 1/HW is already folded into wfc_ref.
        h = jnp.dot(sel_ref[...], acc_ref[...] * wfc_ref[...],
                    preferred_element_type=jnp.float32)              # (b_tile, A)
        # folded BatchNorm (inference) + ReLU
        h = jnp.maximum(h * scale_ref[...] + shift_ref[...], 0.0)
        # all four 1x1-conv heads as a single fused MXU matmul (1/T folded).
        z = jnp.dot(h, w_all_ref[...], preferred_element_type=jnp.float32)
        z = z + b_all_ref[...]                                       # (b_tile, n_pad)

        col = jax.lax.broadcasted_iota(jnp.int32, z.shape, 1)
        sig = jax.nn.sigmoid(z)

        # softmax over the kernel_num block [n_sig, n_tot)
        kmask = (col >= n_sig) & (col < n_tot)
        zk = jnp.where(kmask, z, -jnp.inf)
        zk = zk - jnp.max(zk, axis=-1, keepdims=True)
        ek = jnp.where(kmask, jnp.exp(zk), 0.0)
        denom = jnp.sum(ek, axis=-1, keepdims=True)
        sm = ek * pl.reciprocal(denom, approx=True)   # EUP slot; VALU stays free

        out_ref[...] = jnp.where(col < n_sig, sig, sm).astype(out_ref.dtype)


# ----------------------- One-time host-side weight prep -------------------- #
def prepare_attention_params(params, *, B, H, W, kernel_size, kernel_num,
                             temperature=1.0, bn_eps=1e-5, hw_tile_target=512):
    """BN folding, transposes, branch fusion, 1/HW & 1/T folding and tiling
    metadata — computed once, hoisted out of the per-call path."""
    C = params["w_fc"].shape[1]        # in_planes
    A = params["w_fc"].shape[0]        # attention_channel
    O = params["w_fil"].shape[0]       # out_planes
    KK = kernel_size * kernel_size
    K = kernel_num
    HW = H * W

    b_tile = _pick_b_tile(B)
    rows_block = b_tile * C

    # HW tile on the lane axis: multiple of 128, capped at hw_tile_target.
    tile_hw = min(_round_up(hw_tile_target, _LANE), _round_up(HW, _LANE))
    hw_pad = _round_up(HW, tile_hw)

    f32 = jnp.float32
    scale = (params["bn_gamma"] / jnp.sqrt(params["bn_var"] + bn_eps)).astype(f32)
    shift = (params["bn_beta"] - params["bn_mean"] * scale).astype(f32)

    # fc weight, transposed, 1/HW folded, stacked once per batch row of a tile.
    wfc_t = params["w_fc"].T.astype(f32) * (1.0 / float(HW))          # (C, A)
    wfc_stack = jnp.tile(wfc_t, (b_tile, 1))                          # (b_tile*C, A)
    # selector that sums each group of C consecutive rows into its batch row.
    sel = jnp.repeat(jnp.eye(b_tile, dtype=f32), C, axis=1)           # (b_tile, b_tile*C)

    inv_t = 1.0 / float(temperature)
    n_sig = C + O + KK
    n_tot = n_sig + K
    n_pad = _round_up(n_tot, _LANE)
    w_all = jnp.concatenate(
        [params["w_ch"].T, params["w_fil"].T,
         params["w_sp"].T, params["w_ker"].T], axis=1).astype(f32) * inv_t   # (A, n_tot)
    b_all = jnp.concatenate(
        [params["b_ch"], params["b_fil"],
         params["b_sp"], params["b_ker"]]).astype(f32) * inv_t               # (n_tot,)
    w_all = jnp.pad(w_all, ((0, 0), (0, n_pad - n_tot)))
    b_all = jnp.pad(b_all, (0, n_pad - n_tot)).reshape(1, n_pad)

    arrays = {
        "sel": sel,
        "wfc_stack": wfc_stack,
        "scale": scale.reshape(1, A),
        "shift": shift.reshape(1, A),
        "w_all": w_all,
        "b_all": b_all,
    }

    # VMEM budget: the double-buffered x block dominates; headroom covers the
    # (tiny, internally padded) weights/outputs.  Sized to fit v7x's 64 MiB.
    x_bytes = 2 * rows_block * tile_hw * 4
    vmem_limit = int(min(x_bytes + (4 << 20), 48 << 20))

    meta = dict(B=B, C=C, H=H, W=W, A=A, O=O, KK=KK, K=K, ks=kernel_size,
                b_tile=b_tile, rows_block=rows_block, tile_hw=tile_hw,
                hw_pad=hw_pad, n_sig=n_sig, n_tot=n_tot, n_pad=n_pad,
                vmem_limit=vmem_limit)
    return arrays, meta


# ------------------------------ JAX wrapper -------------------------------- #
def attention_forward(x_nchw, arrays, *, meta):
    m = meta
    B, C, H, W = x_nchw.shape
    HW = H * W

    # lane-dense 2-D slab; reshape of a contiguous NCHW array is free.
    x2 = x_nchw.reshape(B * C, HW)
    if m["hw_pad"] != HW:
        # rare ragged case: zero-pad the spatial axis (zeros don't change the
        # sum and 1/HW folded into the weights uses the true HW).
        x2 = jnp.pad(x2, ((0, 0), (0, m["hw_pad"] - HW)))

    rows_block = m["rows_block"]
    grid = (B // m["b_tile"], m["hw_pad"] // m["tile_hw"])

    kernel = functools.partial(_attention_kernel,
                               n_sig=m["n_sig"], n_tot=m["n_tot"])

    def _const(shape):
        return pl.BlockSpec(shape, lambda b, k: (0,) * len(shape))

    packed = pl.pallas_call(
        kernel,
        out_shape=jax.ShapeDtypeStruct((B, m["n_pad"]), jnp.float32),
        grid_spec=pltpu.PrefetchScalarGridSpec(
            num_scalar_prefetch=0,
            grid=grid,
            in_specs=[
                pl.BlockSpec((rows_block, m["tile_hw"]), lambda b, k: (b, k)),
                _const(arrays["sel"].shape),
                _const(arrays["wfc_stack"].shape),
                _const(arrays["scale"].shape),
                _const(arrays["shift"].shape),
                _const(arrays["w_all"].shape),
                _const(arrays["b_all"].shape),
            ],
            out_specs=pl.BlockSpec((m["b_tile"], m["n_pad"]),
                                   lambda b, k: (b, 0)),
            scratch_shapes=[pltpu.VMEM((rows_block, 1), jnp.float32)],
        ),
        compiler_params=pltpu.CompilerParams(
            dimension_semantics=("parallel", "arbitrary"),
            vmem_limit_bytes=m["vmem_limit"],
        ),
    )(x2, arrays["sel"], arrays["wfc_stack"], arrays["scale"], arrays["shift"],
      arrays["w_all"], arrays["b_all"])

    C_, O, KK, K, ks = m["C"], m["O"], m["KK"], m["K"], m["ks"]
    s0, s1, s2 = C_, C_ + O, C_ + O + KK
    channel_att = packed[:, :s0].reshape(B, C_, 1, 1)
    filter_att = packed[:, s0:s1].reshape(B, O, 1, 1)
    spatial_att = packed[:, s1:s2].reshape(B, 1, 1, 1, ks, ks)
    kernel_att = packed[:, s2:s2 + K].reshape(B, K, 1, 1, 1, 1)
    # TODO(synk): the module's `skip` branches (in_planes==groups==out_planes,
    # kernel_size==1, kernel_num==1) return the constant 1.0 in PyTorch; this
    # wrapper always evaluates all four heads (matching the active config).
    return channel_att, filter_att, spatial_att, kernel_att


# --------------------------- Pure-JAX reference ---------------------------- #
def attention_reference(x_nchw, params, *, kernel_size, kernel_num,
                        temperature=1.0, bn_eps=1e-5):
    B, C, H, W = x_nchw.shape
    pooled = jnp.mean(x_nchw.astype(jnp.float32), axis=(2, 3))        # (B, C)
    h = pooled @ params["w_fc"].T
    scale = params["bn_gamma"] / jnp.sqrt(params["bn_var"] + bn_eps)
    shift = params["bn_beta"] - params["bn_mean"] * scale
    h = jnp.maximum(h * scale + shift, 0.0)
    ch = jax.nn.sigmoid((h @ params["w_ch"].T + params["b_ch"]) / temperature)
    fil = jax.nn.sigmoid((h @ params["w_fil"].T + params["b_fil"]) / temperature)
    sp = jax.nn.sigmoid((h @ params["w_sp"].T + params["b_sp"]) / temperature)
    ker = jax.nn.softmax((h @ params["w_ker"].T + params["b_ker"]) / temperature,
                         axis=-1)
    return (ch.reshape(B, C, 1, 1),
            fil.reshape(B, -1, 1, 1),
            sp.reshape(B, 1, 1, 1, kernel_size, kernel_size),
            ker.reshape(B, kernel_num, 1, 1, 1, 1))


# -------------------------------- Params ----------------------------------- #
def init_params(key, in_planes, out_planes, kernel_size, kernel_num,
                reduction=0.0625, min_channel=16):
    """Synthetic init matching the module's parameter shapes (kaiming-like
    gaussians for conv weights, zero biases, identity BN stats = fresh
    PyTorch module in eval mode)."""
    attention_channel = max(int(in_planes * reduction), min_channel)
    ks = jax.random.split(key, 5)

    def kaiming(k, out_c, in_c):
        std = np.sqrt(2.0 / out_c)   # fan_out of a 1x1 conv
        return std * jax.random.normal(k, (out_c, in_c), dtype=jnp.float32)

    A = attention_channel
    return {
        "w_fc": kaiming(ks[0], A, in_planes),
        "bn_gamma": jnp.ones((A,), jnp.float32),
        "bn_beta": jnp.zeros((A,), jnp.float32),
        "bn_mean": jnp.zeros((A,), jnp.float32),
        "bn_var": jnp.ones((A,), jnp.float32),
        "w_ch": kaiming(ks[1], in_planes, A),
        "b_ch": jnp.zeros((in_planes,), jnp.float32),
        "w_fil": kaiming(ks[2], out_planes, A),
        "b_fil": jnp.zeros((out_planes,), jnp.float32),
        "w_sp": kaiming(ks[3], kernel_size * kernel_size, A),
        "b_sp": jnp.zeros((kernel_size * kernel_size,), jnp.float32),
        "w_ker": kaiming(ks[4], kernel_num, A),
        "b_ker": jnp.zeros((kernel_num,), jnp.float32),
    }


# ---------------------------------- Main ------------------------------------ #
if __name__ == "__main__":
    configs = [
        # primary config: multi-step HW pipeline (grid = (1, 2)), f32 input
        dict(in_planes=4, out_planes=8, kernel_size=3, kernel_num=4,
             B=2, H=32, W=32, dtype=jnp.float32),
        # ragged shapes: HW not a multiple of 128, B*C not a multiple of 8
        dict(in_planes=5, out_planes=6, kernel_size=3, kernel_num=2,
             B=3, H=9, W=7, dtype=jnp.float32),
        # bf16 activations streamed from HBM, f32 accumulation in-kernel
        dict(in_planes=4, out_planes=8, kernel_size=3, kernel_num=4,
             B=2, H=32, W=32, dtype=jnp.bfloat16),
    ]

    key = jax.random.PRNGKey(0)
    for cfg in configs:
        key, k_x, k_p = jax.random.split(key, 3)
        B, H, W = cfg["B"], cfg["H"], cfg["W"]
        x = jax.random.normal(
            k_x, (B, cfg["in_planes"], H, W), dtype=jnp.float32
        ).astype(cfg["dtype"])
        params = init_params(k_p, cfg["in_planes"], cfg["out_planes"],
                             cfg["kernel_size"], cfg["kernel_num"])

        arrays, meta = prepare_attention_params(
            params, B=B, H=H, W=W, kernel_size=cfg["kernel_size"],
            kernel_num=cfg["kernel_num"])
        fwd = jax.jit(functools.partial(attention_forward, meta=meta))

        outs = jax.block_until_ready(fwd(x, arrays))
        refs = attention_reference(x, params, kernel_size=cfg["kernel_size"],
                                   kernel_num=cfg["kernel_num"])

        # sigmoid heads are exact f32 math; the softmax head uses the EUP
        # approximate reciprocal, so it gets a slightly looser tolerance.
        tol_sig = 1e-5 if cfg["dtype"] == jnp.float32 else 1e-3
        tol_ker = 2e-3
        for i, (o, r) in enumerate(zip(outs, refs)):
            assert o.shape == r.shape, (o.shape, r.shape)
            tol = tol_ker if i == 3 else tol_sig
            np.testing.assert_allclose(np.asarray(o), np.asarray(r),
                                       rtol=tol, atol=tol)

    print("KERNEL_OK")
</pallas_src>

<mosaic_0001>
module attributes {stable_mosaic.version = 11 : i64} {
  func.func @_attention_kernel(%arg0: i32, %arg1: i32, %arg2: memref<8x512xf32, #tpu.memory_space<vmem>>, %arg3: memref<2x8xf32, #tpu.memory_space<vmem>>, %arg4: memref<8x16xf32, #tpu.memory_space<vmem>>, %arg5: memref<1x16xf32, #tpu.memory_space<vmem>>, %arg6: memref<1x16xf32, #tpu.memory_space<vmem>>, %arg7: memref<16x128xf32, #tpu.memory_space<vmem>>, %arg8: memref<1x128xf32, #tpu.memory_space<vmem>>, %arg9: memref<2x128xf32, #tpu.memory_space<vmem>>, %arg10: memref<8x1xf32, #tpu.memory_space<vmem>>) attributes {dimension_semantics = [#tpu.dimension_semantics<parallel>, #tpu.dimension_semantics<arbitrary>], iteration_bounds = array<i64: 1, 2>, scalar_prefetch = 0 : i64, scratch_operands = 1 : i64, tpu.core_type = #tpu.core_type<tc>, window_params = [{transform_indices = @transform_0, window_bounds = array<i64: 8, 512>}, {pipeline_mode = #tpu.pipeline_mode<synchronous>, transform_indices = @transform_1, window_bounds = array<i64: 2, 8>}, {pipeline_mode = #tpu.pipeline_mode<synchronous>, transform_indices = @transform_2, window_bounds = array<i64: 8, 16>}, {pipeline_mode = #tpu.pipeline_mode<synchronous>, transform_indices = @transform_3, window_bounds = array<i64: 1, 16>}, {pipeline_mode = #tpu.pipeline_mode<synchronous>, transform_indices = @transform_4, window_bounds = array<i64: 1, 16>}, {pipeline_mode = #tpu.pipeline_mode<synchronous>, transform_indices = @transform_5, window_bounds = array<i64: 16, 128>}, {pipeline_mode = #tpu.pipeline_mode<synchronous>, transform_indices = @transform_6, window_bounds = array<i64: 1, 128>}, {transform_indices = @transform_7, window_bounds = array<i64: 2, 128>}]} {
    %c0_i32 = arith.constant 0 : i32
    %0 = arith.cmpi eq, %arg1, %c0_i32 : i32
    %1 = arith.extui %0 : i1 to i32
    %c0_i32_0 = arith.constant 0 : i32
    %2 = arith.cmpi ne, %1, %c0_i32_0 : i32
    scf.if %2 {
      %cst_7 = arith.constant 0.000000e+00 : f32
      %12 = vector.broadcast %cst_7 : f32 to vector<8x1xf32>
      %c0_8 = arith.constant 0 : index
      %c0_9 = arith.constant 0 : index
      %13 = vector.load %arg10[%c0_8, %c0_9] : memref<8x1xf32, #tpu.memory_space<vmem>>, vector<8x1xf32>
      tpu.vector_store %arg10[%c0_8, %c0_9], %12 {strides = array<i32>} : memref<8x1xf32, #tpu.memory_space<vmem>>, vector<8x1xf32>,
    } else {
    }
    %c0 = arith.constant 0 : index
    %c0_1 = arith.constant 0 : index
    %3 = vector.load %arg2[%c0, %c0_1] : memref<8x512xf32, #tpu.memory_space<vmem>>, vector<8x512xf32>
    %c0_2 = arith.constant 0 : index
    %c0_3 = arith.constant 0 : index
    %4 = vector.load %arg10[%c0_2, %c0_3] : memref<8x1xf32, #tpu.memory_space<vmem>>, vector<8x1xf32>
    %cst = arith.constant dense<0.000000e+00> : vector<8xf32>
    %5 = vector.multi_reduction <add>, %3, %cst [1] : vector<8x512xf32> to vector<8xf32>
    %6 = vector.shape_cast %5 : vector<8xf32> to vector<8x1xf32>
    %7 = arith.addf %4, %6 : vector<8x1xf32>
    %c0_4 = arith.constant 0 : index
    %c0_5 = arith.constant 0 : index
    %8 = vector.load %arg10[%c0_4, %c0_5] : memref<8x1xf32, #tpu.memory_space<vmem>>, vector<8x1xf32>
    tpu.vector_store %arg10[%c0_4, %c0_5], %7 {strides = array<i32>} : memref<8x1xf32, #tpu.memory_space<vmem>>, vector<8x1xf32>,
    %c1_i32 = arith.constant 1 : i32
    %9 = arith.cmpi eq, %arg1, %c1_i32 : i32
    %10 = arith.extui %9 : i1 to i32
    %c0_i32_6 = arith.constant 0 : i32
    %11 = arith.cmpi ne, %10, %c0_i32_6 : i32
    scf.if %11 {
      %c0_7 = arith.constant 0 : index
      %c0_8 = arith.constant 0 : index
      %12 = vector.load %arg3[%c0_7, %c0_8] : memref<2x8xf32, #tpu.memory_space<vmem>>, vector<2x8xf32>
      %c0_9 = arith.constant 0 : index
      %c0_10 = arith.constant 0 : index
      %13 = vector.load %arg10[%c0_9, %c0_10] : memref<8x1xf32, #tpu.memory_space<vmem>>, vector<8x1xf32>
      %c0_11 = arith.constant 0 : index
      %c0_12 = arith.constant 0 : index
      %14 = vector.load %arg4[%c0_11, %c0_12] : memref<8x16xf32, #tpu.memory_space<vmem>>, vector<8x16xf32>
      %15 = vector.broadcast %13 : vector<8x1xf32> to vector<8x16xf32>
      %16 = arith.mulf %15, %14 : vector<8x16xf32>
      %cst_13 = arith.constant dense<0.000000e+00> : vector<2x16xf32>
      %17 = tpu.matmul %12, %16, %cst_13 {dimension_numbers = #tpu.dot_dimension_numbers<[1], [0], [0], [1], [0, 0, 1, 1], [], []>} : vector<2x8xf32>, vector<8x16xf32>, vector<2x16xf32> -> vector<2x16xf32>
      %c0_14 = arith.constant 0 : index
      %c0_15 = arith.constant 0 : index
      %18 = vector.load %arg5[%c0_14, %c0_15] : memref<1x16xf32, #tpu.memory_space<vmem>>, vector<1x16xf32>
      %19 = vector.broadcast %18 : vector<1x16xf32> to vector<2x16xf32>
      %20 = arith.mulf %17, %19 : vector<2x16xf32>
      %c0_16 = arith.constant 0 : index
      %c0_17 = arith.constant 0 : index
      %21 = vector.load %arg6[%c0_16, %c0_17] : memref<1x16xf32, #tpu.memory_space<vmem>>, vector<1x16xf32>
      %22 = vector.broadcast %21 : vector<1x16xf32> to vector<2x16xf32>
      %23 = arith.addf %20, %22 : vector<2x16xf32>
      %cst_18 = arith.constant 0.000000e+00 : f32
      %24 = vector.broadcast %cst_18 : f32 to vector<2x16xf32>
      %25 = arith.maximumf %23, %24 : vector<2x16xf32>
      %c0_19 = arith.constant 0 : index
      %c0_20 = arith.constant 0 : index
      %26 = vector.load %arg7[%c0_19, %c0_20] : memref<16x128xf32, #tpu.memory_space<vmem>>, vector<16x128xf32>
      %cst_21 = arith.constant dense<0.000000e+00> : vector<2x128xf32>
      %27 = tpu.matmul %25, %26, %cst_21 {dimension_numbers = #tpu.dot_dimension_numbers<[1], [0], [0], [1], [0, 0, 1, 1], [], []>} : vector<2x16xf32>, vector<16x128xf32>, vector<2x128xf32> -> vector<2x128xf32>
      %c0_22 = arith.constant 0 : index
      %c0_23 = arith.constant 0 : index
      %28 = vector.load %arg8[%c0_22, %c0_23] : memref<1x128xf32, #tpu.memory_space<vmem>>, vector<1x128xf32>
      %29 = vector.broadcast %28 : vector<1x128xf32> to vector<2x128xf32>
      %30 = arith.addf %27, %29 : vector<2x128xf32>
      %31 = tpu.iota {dimensions = array<i32: 1>} : vector<2x128xi32>
      %32 = arith.negf %30 : vector<2x128xf32>
      %33 = math.exp %32 : vector<2x128xf32>
      %cst_24 = arith.constant 1.000000e+00 : f32
      %34 = vector.broadcast %cst_24 : f32 to vector<2x128xf32>
      %35 = arith.addf %34, %33 : vector<2x128xf32>
      %36 = arith.divf %34, %35 : vector<2x128xf32>
      %c21_i32 = arith.constant 21 : i32
      %37 = vector.broadcast %c21_i32 : i32 to vector<2x128xi32>
      %38 = arith.cmpi sge, %31, %37 : vector<2x128xi32>
      %c25_i32 = arith.constant 25 : i32
      %39 = vector.broadcast %c25_i32 : i32 to vector<2x128xi32>
      %40 = arith.cmpi slt, %31, %39 : vector<2x128xi32>
      %41 = arith.andi %38, %40 : vector<2x128xi1>
      %cst_25 = arith.constant 0xFF800000 : f32
      %42 = vector.broadcast %cst_25 : f32 to vector<2x128xf32>
      %43 = arith.select %41, %30, %42 : vector<2x128xi1>, vector<2x128xf32>
      %cst_26 = arith.constant dense<0xFF800000> : vector<2xf32>
      %44 = vector.multi_reduction <maximumf>, %43, %cst_26 [1] : vector<2x128xf32> to vector<2xf32>
      %45 = vector.shape_cast %44 : vector<2xf32> to vector<2x1xf32>
      %46 = vector.broadcast %45 : vector<2x1xf32> to vector<2x128xf32>
      %47 = arith.subf %43, %46 : vector<2x128xf32>
      %48 = math.exp %47 : vector<2x128xf32>
      %cst_27 = arith.constant 0.000000e+00 : f32
      %49 = vector.broadcast %cst_27 : f32 to vector<2x128xf32>
      %50 = arith.select %41, %48, %49 : vector<2x128xi1>, vector<2x128xf32>
      %cst_28 = arith.constant dense<0.000000e+00> : vector<2xf32>
      %51 = vector.multi_reduction <add>, %50, %cst_28 [1] : vector<2x128xf32> to vector<2xf32>
      %52 = vector.shape_cast %51 : vector<2xf32> to vector<2x1xf32>
      %53 = tpu.reciprocal %52 {approx = true} : vector<2x1xf32> -> vector<2x1xf32>
      %54 = vector.broadcast %53 : vector<2x1xf32> to vector<2x128xf32>
      %55 = arith.mulf %50, %54 : vector<2x128xf32>
      %c21_i32_29 = arith.constant 21 : i32
      %56 = vector.broadcast %c21_i32_29 : i32 to vector<2x128xi32>
      %57 = arith.cmpi slt, %31, %56 : vector<2x128xi32>
      %58 = arith.select %57, %36, %55 : vector<2x128xi1>, vector<2x128xf32>
      %c0_30 = arith.constant 0 : index
      %c0_31 = arith.constant 0 : index
      %59 = vector.load %arg9[%c0_30, %c0_31] : memref<2x128xf32, #tpu.memory_space<vmem>>, vector<2x128xf32>
      tpu.vector_store %arg9[%c0_30, %c0_31], %58 {strides = array<i32>} : memref<2x128xf32, #tpu.memory_space<vmem>>, vector<2x128xf32>,
    } else {
    }
    return
  }
  func.func @transform_0(%arg0: i32, %arg1: i32) -> (i32, i32) {
    %c0_i32 = arith.constant 0 : i32
    return %arg0, %arg1 : i32, i32
  }
  func.func @transform_1(%arg0: i32, %arg1: i32) -> (i32, i32) {
    %c0_i32 = arith.constant 0 : i32
    %c0_i32_0 = arith.constant 0 : i32
    %c0_i32_1 = arith.constant 0 : i32
    return %c0_i32, %c0_i32_0 : i32, i32
  }
  func.func @transform_2(%arg0: i32, %arg1: i32) -> (i32, i32) {
    %c0_i32 = arith.constant 0 : i32
    %c0_i32_0 = arith.constant 0 : i32
    %c0_i32_1 = arith.constant 0 : i32
    return %c0_i32, %c0_i32_0 : i32, i32
  }
  func.func @transform_3(%arg0: i32, %arg1: i32) -> (i32, i32) {
    %c0_i32 = arith.constant 0 : i32
    %c0_i32_0 = arith.constant 0 : i32
    %c0_i32_1 = arith.constant 0 : i32
    return %c0_i32, %c0_i32_0 : i32, i32
  }
  func.func @transform_4(%arg0: i32, %arg1: i32) -> (i32, i32) {
    %c0_i32 = arith.constant 0 : i32
    %c0_i32_0 = arith.constant 0 : i32
    %c0_i32_1 = arith.constant 0 : i32
    return %c0_i32, %c0_i32_0 : i32, i32
  }
  func.func @transform_5(%arg0: i32, %arg1: i32) -> (i32, i32) {
    %c0_i32 = arith.constant 0 : i32
    %c0_i32_0 = arith.constant 0 : i32
    %c0_i32_1 = arith.constant 0 : i32
    return %c0_i32, %c0_i32_0 : i32, i32
  }
  func.func @transform_6(%arg0: i32, %arg1: i32) -> (i32, i32) {
    %c0_i32 = arith.constant 0 : i32
    %c0_i32_0 = arith.constant 0 : i32
    %c0_i32_1 = arith.constant 0 : i32
    return %c0_i32, %c0_i32_0 : i32, i32
  }
  func.func @transform_7(%arg0: i32, %arg1: i32) -> (i32, i32) {
    %c0_i32 = arith.constant 0 : i32
    %c0_i32_0 = arith.constant 0 : i32
    return %arg0, %c0_i32 : i32, i32
  }
}

</mosaic_0001>

<llo_original>
// kernel: attention_forward.1
$region0: #{attention_forward.1}
  #allocation0 [shape = 'u32[]', space=smem, size = 0x4, offset = 0x4, fixed_abs, tag = 'smem constant byte address 0x4 - core index']
  #allocation1 [shape = 'u32[144,128]{1,0:T(1,128)}', space=vmem, size = 0x12000, scoped, tag = 'internal scratch']
  #allocation2 [shape = 'f32[8,1]{1,0:T(8,128)}', space=vmem, size = 0x1000, scoped, tag = 'scratch operand']
  %s0 = inlined_call_operand.vmem [shape: f32[8,1024], index: 0, kind: input, shape index: {}]
  %s1 = inlined_call_operand.vmem [shape: f32[2,8], index: 1, kind: input, shape index: {}]
  %s2 = inlined_call_operand.vmem [shape: f32[8,16], index: 2, kind: input, shape index: {}]
  %s3 = inlined_call_operand.vmem [shape: f32[1,16], index: 3, kind: input, shape index: {}]
  %s4 = inlined_call_operand.vmem [shape: f32[1,16], index: 4, kind: input, shape index: {}]
  %s5 = inlined_call_operand.vmem [shape: f32[16,128], index: 5, kind: input, shape index: {}]
  %s6 = inlined_call_operand.vmem [shape: f32[1,128], index: 6, kind: input, shape index: {}]
  %s7 = inlined_call_operand.vmem [shape: f32[2,128], index: 7, kind: output, shape index: {}]
  %s8 = sld [smem:[#allocation0]]
  $region69: #{attention_forward.1} parent=0
    _
  %s10 = ssub.s32 1, %s8
  %s11 = scalar_select 0, %s10, %s8
  loop: start=0, step=1, limit=4
  $region2: #{attention_forward.1} parent=0 // loop_pre_header
    _
  $region3: #{attention_forward.1} parent=0 // loop_header
    %s13 = sphi 0, %s17
    %p14 = scmp.ge.s32.totalorder %s13, 4
    %s20 = sphi 0, %s32
    %s21 = sphi 0, %s28
    %s22 = sphi 0, %s20
    %s23 = sphi 0, %s21
    %s24 = sphi 0, %s22
    %s25 = sphi 0, %s23
    %s37 = sphi 0, %s39
    %s40 = sphi 0, %s37
    %s41 = sphi 0, %s40
    %s57 = sphi 0, %s41
    %s61 = sphi 0, %s61
    %s63 = sphi 0, %s61
    %s64 = sphi 0, %s63
    %s78 = sphi 0, %s64
    %s82 = sphi 0, %s82
    %s84 = sphi 0, %s82
    %s85 = sphi 0, %s84
    %s99 = sphi 0, %s85
    %s103 = sphi 0, %s103
    %s105 = sphi 0, %s103
    %s106 = sphi 0, %s105
    %s120 = sphi 0, %s106
    %s124 = sphi 0, %s124
    %s126 = sphi 0, %s124
    %s127 = sphi 0, %s126
    %s141 = sphi 0, %s127
    %s145 = sphi 0, %s145
    %s147 = sphi 0, %s145
    %s148 = sphi 0, %s147
    %s162 = sphi 0, %s148
    %s166 = sphi 0, %s166
    %s168 = sphi 0, %s166
    %s169 = sphi 0, %s168
    %s183 = sphi 0, %s169
    %s189 = sphi 0, %s191
    %s192 = sphi 0, %s189
    %s193 = sphi 0, %s192
    %s209 = sphi 0, %s193
  $region4: #{attention_forward.1} parent=0 // loop_header_branch
    %16 = sbr.rel (%p14) target = $region8
  $region5: #{attention_forward.1} parent=0 // loop_body
    %s18 = ssub.s32 %s13, 1
    %s19 = ssub.s32 %s13, 2
    %s26 = sadd.s32 1, %s21
    %p27 = scmp.ge.s32.totalorder %s26, 2
    %s28 = scalar_select %p27, 0, %s26
    %s29 = sadd.s32 1, %s20
    %s30 = scalar_select %p27, %s29, %s20
    %p31 = scmp.ge.s32.totalorder %s30, 1
    %s32 = scalar_select %p31, 0, %s30
    %s33 = ssub.s32 %s20, %s32
    %s34 = ssub.s32 %s21, %s28
    %s35 = sor.u32 %s33, %s34
    %p36 = scmp.eq.s32.totalorder %s35, 0
    %s38 = sadd.s32 %s37, 1
    %s39 = scalar_select %p36, %s37, %s38
    %p42 = pneg %p36
    %p43 = scmp.eq.s32.totalorder %s13, 1
    %p44 = por %p42, %p43
    %p45 = scmp.ne.s32.totalorder %s37, %s40
    %p46 = scmp.eq.s32.totalorder %s13, 0
    %p47 = por %p45, %p46
    %p48 = scmp.ne.s32.totalorder %s37, %s40
    %p49 = scmp.eq.s32.totalorder %s18, 1
    %p50 = por %p48, %p49
    %p51 = scmp.ne.s32.totalorder %s40, %s41
    %p52 = scmp.eq.s32.totalorder %s18, 0
    %p53 = por %p51, %p52
    %p54 = scmp.ne.s32.totalorder %s40, %s41
    %p55 = scmp.eq.s32.totalorder %s19, 1
    %p56 = por %p54, %p55
    %p58 = scmp.ne.s32.totalorder %s41, %s57
    %p59 = scmp.eq.s32.totalorder %s19, 0
    %p60 = por %p58, %p59
    %s62 = sadd.s32 %s61, 1
    %p65 = scmp.eq.s32.totalorder %s13, 1
    %p66 = scmp.ne.s32.totalorder %s61, %s63
    %p67 = scmp.eq.s32.totalorder %s13, 0
    %p68 = por %p66, %p67
    %p69 = scmp.ne.s32.totalorder %s61, %s63
    %p70 = scmp.eq.s32.totalorder %s18, 1
    %p71 = por %p69, %p70
    %p72 = scmp.ne.s32.totalorder %s63, %s64
    %p73 = scmp.eq.s32.totalorder %s18, 0
    %p74 = por %p72, %p73
    %p75 = scmp.ne.s32.totalorder %s63, %s64
    %p76 = scmp.eq.s32.totalorder %s19, 1
    %p77 = por %p75, %p76
    %p79 = scmp.ne.s32.totalorder %s64, %s78
    %p80 = scmp.eq.s32.totalorder %s19, 0
    %p81 = por %p79, %p80
    %s83 = sadd.s32 %s82, 1
    %p86 = scmp.eq.s32.totalorder %s13, 1
    %p87 = scmp.ne.s32.totalorder %s82, %s84
    %p88 = scmp.eq.s32.totalorder %s13, 0
    %p89 = por %p87, %p88
    %p90 = scmp.ne.s32.totalorder %s82, %s84
    %p91 = scmp.eq.s32.totalorder %s18, 1
    %p92 = por %p90, %p91
    %p93 = scmp.ne.s32.totalorder %s84, %s85
    %p94 = scmp.eq.s32.totalorder %s18, 0
    %p95 = por %p93, %p94
    %p96 = scmp.ne.s32.totalorder %s84, %s85
    %p97 = scmp.eq.s32.totalorder %s19, 1
    %p98 = por %p96, %p97
    %p100 = scmp.ne.s32.totalorder %s85, %s99
    %p101 = scmp.eq.s32.totalorder %s19, 0
    %p102 = por %p100, %p101
    %s104 = sadd.s32 %s103, 1
    %p107 = scmp.eq.s32.totalorder %s13, 1
    %p108 = scmp.ne.s32.totalorder %s103, %s105
    %p109 = scmp.eq.s32.totalorder %s13, 0
    %p110 = por %p108, %p109
    %p111 = scmp.ne.s32.totalorder %s103, %s105
    %p112 = scmp.eq.s32.totalorder %s18, 1
    %p113 = por %p111, %p112
    %p114 = scmp.ne.s32.totalorder %s105, %s106
    %p115 = scmp.eq.s32.totalorder %s18, 0
    %p116 = por %p114, %p115
    %p117 = scmp.ne.s32.totalorder %s105, %s106
    %p118 = scmp.eq.s32.totalorder %s19, 1
    %p119 = por %p117, %p118
    %p121 = scmp.ne.s32.totalorder %s106, %s120
    %p122 = scmp.eq.s32.totalorder %s19, 0
    %p123 = por %p121, %p122
    %s125 = sadd.s32 %s124, 1
    %p128 = scmp.eq.s32.totalorder %s13, 1
    %p129 = scmp.ne.s32.totalorder %s124, %s126
    %p130 = scmp.eq.s32.totalorder %s13, 0
    %p131 = por %p129, %p130
    %p132 = scmp.ne.s32.totalorder %s124, %s126
    %p133 = scmp.eq.s32.totalorder %s18, 1
    %p134 = por %p132, %p133
    %p135 = scmp.ne.s32.totalorder %s126, %s127
    %p136 = scmp.eq.s32.totalorder %s18, 0
    %p137 = por %p135, %p136
    %p138 = scmp.ne.s32.totalorder %s126, %s127
    %p139 = scmp.eq.s32.totalorder %s19, 1
    %p140 = por %p138, %p139
    %p142 = scmp.ne.s32.totalorder %s127, %s141
    %p143 = scmp.eq.s32.totalorder %s19, 0
    %p144 = por %p142, %p143
    %s146 = sadd.s32 %s145, 1
    %p149 = scmp.eq.s32.totalorder %s13, 1
    %p150 = scmp.ne.s32.totalorder %s145, %s147
    %p151 = scmp.eq.s32.totalorder %s13, 0
    %p152 = por %p150, %p151
    %p153 = scmp.ne.s32.totalorder %s145, %s147
    %p154 = scmp.eq.s32.totalorder %s18, 1
    %p155 = por %p153, %p154
    %p156 = scmp.ne.s32.totalorder %s147, %s148
    %p157 = scmp.eq.s32.totalorder %s18, 0
    %p158 = por %p156, %p157
    %p159 = scmp.ne.s32.totalorder %s147, %s148
    %p160 = scmp.eq.s32.totalorder %s19, 1
    %p161 = por %p159, %p160
    %p163 = scmp.ne.s32.totalorder %s148, %s162
    %p164 = scmp.eq.s32.totalorder %s19, 0
    %p165 = por %p163, %p164
    %s167 = sadd.s32 %s166, 1
    %p170 = scmp.eq.s32.totalorder %s13, 1
    %p171 = scmp.ne.s32.totalorder %s166, %s168
    %p172 = scmp.eq.s32.totalorder %s13, 0
    %p173 = por %p171, %p172
    %p174 = scmp.ne.s32.totalorder %s166, %s168
    %p175 = scmp.eq.s32.totalorder %s18, 1
    %p176 = por %p174, %p175
    %p177 = scmp.ne.s32.totalorder %s168, %s169
    %p178 = scmp.eq.s32.totalorder %s18, 0
    %p179 = por %p177, %p178
    %p180 = scmp.ne.s32.totalorder %s168, %s169
    %p181 = scmp.eq.s32.totalorder %s19, 1
    %p182 = por %p180, %p181
    %p184 = scmp.ne.s32.totalorder %s169, %s183
    %p185 = scmp.eq.s32.totalorder %s19, 0
    %p186 = por %p184, %p185
    %s187 = ssub.s32 %s20, %s32
    %p188 = scmp.eq.s32.totalorder %s187, 0
    %s190 = sadd.s32 %s189, 1
    %s191 = scalar_select %p188, %s189, %s190
    %p194 = pneg %p188
    %p195 = scmp.eq.s32.totalorder %s13, 1
    %p196 = por %p194, %p195
    %p197 = scmp.ne.s32.totalorder %s189, %s192
    %p198 = scmp.eq.s32.totalorder %s13, 0
    %p199 = por %p197, %p198
    %p200 = scmp.ne.s32.totalorder %s189, %s192
    %p201 = scmp.eq.s32.totalorder %s18, 1
    %p202 = por %p200, %p201
    %p203 = scmp.ne.s32.totalorder %s192, %s193
    %p204 = scmp.eq.s32.totalorder %s18, 0
    %p205 = por %p203, %p204
    %p206 = scmp.ne.s32.totalorder %s192, %s193
    %p207 = scmp.eq.s32.totalorder %s19, 1
    %p208 = por %p206, %p207
    %p210 = scmp.ne.s32.totalorder %s193, %s209
    %p211 = scmp.eq.s32.totalorder %s19, 0
    %p212 = por %p210, %p211
    %p213 = scmp.le.s32.totalorder 1, %s13
    %p214 = scmp.lt.s32.totalorder %s13, 3
    %p215 = pnand %p213, %p214
    %p216 = pneg %p215
    // Predicated region
    $region9: #{attention_forward.1} parent=5 // pred_check
      _
    $region10: #{attention_forward.1} parent=5 // pred_check_branch
      %218 = sbr.rel (%p215) target = $region12
    $region11: #{attention_forward.1} parent=5 // pred_region
      %s219 = ssub.s32 %s13, 1
      // Predicated region
      $region13: #{attention_forward.1} parent=11 // pred_check
        %p220 = pneg %p74
      $region14: #{attention_forward.1} parent=11 // pred_check_branch
        %222 = sbr.rel (%p220) target = $region16
      $region15: #{attention_forward.1} parent=11 // pred_region
        _
      $region16: #{attention_forward.1} parent=11 // pred_fallthru
        _
      // Predicated region
      $region17: #{attention_forward.1} parent=11 // pred_check
        %p223 = pneg %p95
      $region18: #{attention_forward.1} parent=11 // pred_check_branch
        %225 = sbr.rel (%p223) target = $region20
      $region19: #{attention_forward.1} parent=11 // pred_region
        _
      $region20: #{attention_forward.1} parent=11 // pred_fallthru
        _
      // Predicated region
      $region21: #{attention_forward.1} parent=11 // pred_check
        %p226 = pneg %p116
      $region22: #{attention_forward.1} parent=11 // pred_check_branch
        %228 = sbr.rel (%p226) target = $region24
      $region23: #{attention_forward.1} parent=11 // pred_region
        _
      $region24: #{attention_forward.1} parent=11 // pred_fallthru
        _
      // Predicated region
      $region25: #{attention_forward.1} parent=11 // pred_check
        %p229 = pneg %p137
      $region26: #{attention_forward.1} parent=11 // pred_check_branch
        %231 = sbr.rel (%p229) target = $region28
      $region27: #{attention_forward.1} parent=11 // pred_region
        _
      $region28: #{attention_forward.1} parent=11 // pred_fallthru
        _
      // Predicated region
      $region29: #{attention_forward.1} parent=11 // pred_check
        %p232 = pneg %p158
      $region30: #{attention_forward.1} parent=11 // pred_check_branch
        %234 = sbr.rel (%p232) target = $region32
      $region31: #{attention_forward.1} parent=11 // pred_region
        _
      $region32: #{attention_forward.1} parent=11 // pred_fallthru
        _
      // Predicated region
      $region33: #{attention_forward.1} parent=11 // pred_check
        %p235 = pneg %p179
      $region34: #{attention_forward.1} parent=11 // pred_check_branch
        %237 = sbr.rel (%p235) target = $region36
      $region35: #{attention_forward.1} parent=11 // pred_region
        _
      $region36: #{attention_forward.1} parent=11 // pred_fallthru
        _
    $region12: #{attention_forward.1} parent=5 // pred_fallthru
      _
    %p238 = scmp.lt.s32.totalorder %s13, 2
    // Predicated region
    $region37: #{attention_forward.1} parent=5 // pred_check
      %p239 = pneg %p238
    $region38: #{attention_forward.1} parent=5 // pred_check_branch
      %241 = sbr.rel (%p239) target = $region40
    $region39: #{attention_forward.1} parent=5 // pred_region
      // Predicated region
      $region41: #{attention_forward.1} parent=39 // pred_check
        %p242 = pneg %p47
      $region42: #{attention_forward.1} parent=39 // pred_check_branch
        %244 = sbr.rel (%p242) target = $region44
      $region43: #{attention_forward.1} parent=39 // pred_region
        %s245 = smul.u32 4, %s21
        %p246 = scmp.lt.s32.totalorder %s20, 0
        %s247 = scalar_select %p246, %s20, 0
        %p248 = scmp.lt.s32.totalorder %s245, 7
        %s249 = scalar_select %p248, %s245, 7
        %s250 = smul.addr %s247, 8
        %s251 = sadd.s32 %s249, %s250
        %s252 = smul.addr %s251, 8
        %s253 = scalar_lea.vmem %s0, %s252
        %s254 = smul.u32 4, %s21
      $region44: #{attention_forward.1} parent=39 // pred_fallthru
        _
    $region40: #{attention_forward.1} parent=5 // pred_fallthru
      _
    %p255 = scmp.le.s32.totalorder 1, %s13
    %p256 = scmp.lt.s32.totalorder %s13, 3
    %p257 = pnand %p255, %p256
    %p258 = pneg %p257
    // Predicated region
    $region45: #{attention_forward.1} parent=5 // pred_check
      _
    $region46: #{attention_forward.1} parent=5 // pred_check_branch
      %260 = sbr.rel (%p257) target = $region48
    $region47: #{attention_forward.1} parent=5 // pred_region
      %s261 = ssub.s32 %s13, 1
      %s262 = smul.u32 4, %s23
      %p263 = scmp.lt.s32.totalorder %s22, 0
      %s264 = scalar_select %p263, %s22, 0
      %p265 = scmp.lt.s32.totalorder %s262, 7
      %s266 = scalar_select %p265, %s262, 7
      %s267 = smul.addr %s264, 8
      %s268 = sadd.s32 %s266, %s267
      %s269 = smul.addr %s268, 8
      %s270 = scalar_lea.vmem %s0, %s269
      %p271 = pneg %p53
      %p272 = pneg %p50
      %p273 = pneg %p74
      %p274 = pneg %p71
      %p275 = pneg %p95
      %p276 = pneg %p92
      %p277 = pneg %p116
      %p278 = pneg %p113
      %p279 = pneg %p137
      %p280 = pneg %p134
      %p281 = pneg %p158
      %p282 = pneg %p155
      %p283 = pneg %p179
      %p284 = pneg %p176
      %p285 = pneg %p205
      %p286 = pneg %p202
      %p287 = scmp.lt.s32.totalorder %s22, 0
      %s288 = scalar_select %p287, %s22, 0
      %s289 = smul.addr %s288, 2
      %s290 = scalar_lea.vmem %s7, %s289
      %s291 = smul.u32 4, %s23
      %p292 = scmp.lt.s32.totalorder %s22, 0
      %s293 = scalar_select %p292, %s22, 0
      %p294 = scmp.lt.s32.totalorder %s291, 7
      %s295 = scalar_select %p294, %s291, 7
      %s296 = smul.addr %s293, 8
      %s297 = sadd.s32 %s295, %s296
      %s298 = smul.addr %s297, 8
      %s299 = scalar_lea.vmem %s0, %s298
      %s300 = smul.u32 4, %s23
      %p301 = scmp.lt.s32.totalorder %s22, 0
      %s302 = scalar_select %p301, %s22, 0
      %s303 = smul.addr %s302, 2
      %s304 = scalar_lea.vmem %s7, %s303
      %p305 = scmp.eq.s32.totalorder %s23, 0
      // Predicated region
      $region49: #{attention_forward.1} parent=47 // pred_check
        %p306 = pneg %p305
      $region50: #{attention_forward.1} parent=47 // pred_check_branch
        %308 = sbr.rel (%p306) target = $region52
      $region51: #{attention_forward.1} parent=47 // pred_region
        %vm309 = vcmask 7168
        %310 = vst.msk [vmem:[#allocation2] sm:$0xff] %vm309, 0.0
      $region52: #{attention_forward.1} parent=47 // pred_fallthru
        _
      %v311 = vld [vmem:[%s299] sm:$0xff]
      %v312 = vld [vmem:[%s299 + $0x8] sm:$0xff]
      %v313 = vld [vmem:[%s299 + $0x10] sm:$0xff]
      %v314 = vld [vmem:[%s299 + $0x18] sm:$0xff]
      %v315 = vld [vmem:[#allocation2] sm:$0xff]
      %v316 = vadd.f32 %v311, %v312
      %v317 = vadd.f32 %v316, %v313
      %v318 = vadd.f32 %v317, %v314
      %319 = vadd.xlane.f32.xlu0 %v318
      %v320 = vpop.xlane.xlu0 %319
      %v321 = vadd.f32 %v315, %v320
      %vm322 = vcmask 7168
      %323 = vst.msk [vmem:[#allocation2] sm:$0xff] %vm322, %v321
      %p324 = scmp.eq.s32.totalorder %s23, 1
      // Predicated region
      $region53: #{attention_forward.1} parent=47 // pred_check
        %p325 = pneg %p324
      $region54: #{attention_forward.1} parent=47 // pred_check_branch
        %327 = sbr.rel (%p325) target = $region56
      $region55: #{attention_forward.1} parent=47 // pred_region
        %v328 = vld [vmem:[%s1] sm:$0x3]
        %v329 = vld [vmem:[#allocation2] sm:$0xff]
        %v330 = vld [vmem:[%s2] sm:$0xff]
        %332 = vset.pattern.permute.xlu0 0
        %333 = vperm.xlu0 %332, %v329
        %v334 = vpop.permute.xlu0 %333
        %v336 = vmul.f32 %v334, %v330
        %vm337 = vcmask 64512
        %v339 = vsel %vm337, %v328, 0
        %341 = vmatprep.subr.mxu0 0.0
        %342 = vmatpush1.msra.mxu0 %v336
        %343 = vmatprep.subr.mxu0 0.0
        %344 = vmatpush1.msra.mxu0 0.0
        %345 = vmatprep.subr.mxu0 0.0
        %346 = vmatpush1.msra.mxu0 0.0
        %347 = vmatprep.subr.mxu0 0.0
        %348 = vmatpush1.msra.mxu0 0.0
        %349 = vmatprep.subr.mxu0 0.0
        %350 = vmatpush1.msra.mxu0 0.0
        %351 = vmatprep.subr.mxu0 0.0
        %352 = vmatpush1.msra.mxu0 0.0
        %353 = vmatprep.subr.mxu0 0.0
        %354 = vmatpush1.msra.mxu0 0.0
        %355 = vmatprep.subr.mxu0 0.0
        %356 = vmatpush1.msra.mxu0 0.0
        %357 = vmatprep.subr.mxu0 0.0
        %358 = vmatpush1.msra.mxu0 0.0
        %359 = vmatprep.subr.mxu0 0.0
        %360 = vmatpush1.msra.mxu0 0.0
        %361 = vmatprep.subr.mxu0 0.0
        %362 = vmatpush1.msra.mxu0 0.0
        %363 = vmatprep.subr.mxu0 0.0
        %364 = vmatpush1.msra.mxu0 0.0
        %365 = vmatprep.subr.mxu0 0.0
        %366 = vmatpush1.msra.mxu0 0.0
        %367 = vmatprep.subr.mxu0 0.0
        %368 = vmatpush1.msra.mxu0 0.0
        %369 = vmatprep.subr.mxu0 0.0
        %370 = vmatpush1.msra.mxu0 0.0
        %371 = vmatprep.subr.mxu0 0.0
        %372 = vmatpush1.msra.mxu0 0.0
        %373 = vmatprep.subr.mxu0 0.0
        %374 = vmatpush1.msra.mxu0 0.0
        %375 = vmatprep.subr.mxu0 0.0
        %376 = vmatpush1.msra.mxu0 0.0
        %377 = vmatprep.subr.mxu0 0.0
        %378 = vmatpush1.msra.mxu0 0.0
        %379 = vmatprep.subr.mxu0 0.0
        %380 = vmatpush1.msra.mxu0 0.0
        %381 = vmatprep.subr.mxu0 0.0
        %382 = vmatpush1.msra.mxu0 0.0
        %383 = vmatprep.subr.mxu0 0.0
        %384 = vmatpush1.msra.mxu0 0.0
        %385 = vmatprep.subr.mxu0 0.0
        %386 = vmatpush1.msra.mxu0 0.0
        %387 = vmatprep.subr.mxu0 0.0
        %388 = vmatpush1.msra.mxu0 0.0
        %389 = vmatprep.subr.mxu0 0.0
        %390 = vmatpush1.msra.mxu0 0.0
        %391 = vmatprep.subr.mxu0 0.0
        %392 = vmatpush1.msra.mxu0 0.0
        %393 = vmatprep.subr.mxu0 0.0
        %394 = vmatpush1.msra.mxu0 0.0
        %395 = vmatprep.subr.mxu0 0.0
        %396 = vmatpush1.msra.mxu0 0.0
        %397 = vmatprep.subr.mxu0 0.0
        %398 = vmatpush1.msra.mxu0 0.0
        %399 = vmatprep.subr.mxu0 0.0
        %400 = vmatpush1.msra.mxu0 0.0
        %401 = vmatprep.subr.mxu0 0.0
        %402 = vmatpush1.msra.mxu0 0.0
        %403 = vmatprep.subr.mxu0 0.0
        %404 = vmatpush1.msra.mxu0 0.0
        %405 = vmatprep.mubr.f32.mxu0 0.0
        %406 = vmatmul.mubr.f32.gmra.mrb[0].mxu0 %v339
        %v407 = vpop.f32.mrb[0].mxu0
        %v408 = vadd.f32 0.0, %v407
        %v409 = vpop.f32.mrb[0].mxu0
        %410 = vdwg.mxu0
        %v411 = vld [vmem:[%s3] sm:$0x1]
        %v413 = vlaneseq
        %v414 = vshrl.u32 %v413, 7
        %v415 = vsub.s32 0, %v414
        %v416 = vrot.slane %v411, %v415
        %v418 = vmul.f32 %v408, %v416
        %v419 = vld [vmem:[%s4] sm:$0x1]
        %v421 = vlaneseq
        %v422 = vshrl.u32 %v421, 7
        %v423 = vsub.s32 0, %v422
        %v424 = vrot.slane %v419, %v423
        %v426 = vadd.f32 %v418, %v424
        %v427 = vmax.f32 %v426, 0.0
        %v428 = vld [vmem:[%s5] sm:$0xff]
        %v429 = vld [vmem:[%s5 + $0x8] sm:$0xff]
        %v430 = vld [vmem:[%s6] sm:$0x1]
        %v432 = vlaneseq
        %v433 = vshrl.u32 %v432, 7
        %v434 = vsub.s32 0, %v433
        %v435 = vrot.slane %v430, %v434
        %vm437 = vcmask 130048
        %v439 = vsel %vm437, %v427, 0
        %441 = vmatprep.subr.mxu0 0.0
        %442 = vmatpush1.msra.mxu0 %v428
        %443 = vmatprep.subr.mxu0 0.0
        %444 = vmatpush1.msra.mxu0 %v429
        %445 = vmatprep.subr.mxu0 0.0
        %446 = vmatpush1.msra.mxu0 0.0
        %447 = vmatprep.subr.mxu0 0.0
        %448 = vmatpush1.msra.mxu0 0.0
        %449 = vmatprep.subr.mxu0 0.0
        %450 = vmatpush1.msra.mxu0 0.0
        %451 = vmatprep.subr.mxu0 0.0
        %452 = vmatpush1.msra.mxu0 0.0
        %453 = vmatprep.subr.mxu0 0.0
        %454 = vmatpush1.msra.mxu0 0.0
        %455 = vmatprep.subr.mxu0 0.0
        %456 = vmatpush1.msra.mxu0 0.0
        %457 = vmatprep.subr.mxu0 0.0
        %458 = vmatpush1.msra.mxu0 0.0
        %459 = vmatprep.subr.mxu0 0.0
        %460 = vmatpush1.msra.mxu0 0.0
        %461 = vmatprep.subr.mxu0 0.0
        %462 = vmatpush1.msra.mxu0 0.0
        %463 = vmatprep.subr.mxu0 0.0
        %464 = vmatpush1.msra.mxu0 0.0
        %465 = vmatprep.subr.mxu0 0.0
        %466 = vmatpush1.msra.mxu0 0.0
        %467 = vmatprep.subr.mxu0 0.0
        %468 = vmatpush1.msra.mxu0 0.0
        %469 = vmatprep.subr.mxu0 0.0
        %470 = vmatpush1.msra.mxu0 0.0
        %471 = vmatprep.subr.mxu0 0.0
        %472 = vmatpush1.msra.mxu0 0.0
        %473 = vmatprep.subr.mxu0 0.0
        %474 = vmatpush1.msra.mxu0 0.0
        %475 = vmatprep.subr.mxu0 0.0
        %476 = vmatpush1.msra.mxu0 0.0
        %477 = vmatprep.subr.mxu0 0.0
        %478 = vmatpush1.msra.mxu0 0.0
        %479 = vmatprep.subr.mxu0 0.0
        %480 = vmatpush1.msra.mxu0 0.0
        %481 = vmatprep.subr.mxu0 0.0
        %482 = vmatpush1.msra.mxu0 0.0
        %483 = vmatprep.subr.mxu0 0.0
        %484 = vmatpush1.msra.mxu0 0.0
        %485 = vmatprep.subr.mxu0 0.0
        %486 = vmatpush1.msra.mxu0 0.0
        %487 = vmatprep.subr.mxu0 0.0
        %488 = vmatpush1.msra.mxu0 0.0
        %489 = vmatprep.subr.mxu0 0.0
        %490 = vmatpush1.msra.mxu0 0.0
        %491 = vmatprep.subr.mxu0 0.0
        %492 = vmatpush1.msra.mxu0 0.0
        %493 = vmatprep.subr.mxu0 0.0
        %494 = vmatpush1.msra.mxu0 0.0
        %495 = vmatprep.subr.mxu0 0.0
        %496 = vmatpush1.msra.mxu0 0.0
        %497 = vmatprep.subr.mxu0 0.0
        %498 = vmatpush1.msra.mxu0 0.0
        %499 = vmatprep.subr.mxu0 0.0
        %500 = vmatpush1.msra.mxu0 0.0
        %501 = vmatprep.subr.mxu0 0.0
        %502 = vmatpush1.msra.mxu0 0.0
        %503 = vmatprep.subr.mxu0 0.0
        %504 = vmatpush1.msra.mxu0 0.0
        %505 = vmatprep.mubr.f32.mxu0 0.0
        %506 = vmatmul.mubr.f32.gmra.mrb[0].mxu0 %v439
        %v507 = vpop.f32.mrb[0].mxu0
        %v508 = vadd.f32 %v435, %v507
        %v509 = vpop.f32.mrb[0].mxu0
        %510 = vdwg.mxu0
        %v511 = vlaneseq
        %v512 = vand.u32 %v511, 127
        %v513 = vxor.u32 %v508, 2147483648
        %v514 = vmul.f32 %v513, 1.442695
        %v515 = vpow.pop %v514
        %v516 = vadd.f32 %v515, 1.0
        %v517 = vrcp.pop %v516
        %v518 = vmul.f32 1.0, %v517
        %vm519 = vcmp.ge.s32.totalorder %v512, 21
        %vm520 = vcmp.lt.s32.totalorder %v512, 25
        %vm521 = vmand %vm519, %vm520
        %v522 = vsel %vm521, %v508, -inf
        %vm523 = vcmask 1041408
        %v524 = vsel %vm523, %v522, -inf
        %525 = vmax.xlane.f32.xlu0 %v524
        %v526 = vpop.xlane.xlu0 %525
        %v527 = vsub.f32 %v522, %v526
        %v528 = vmul.f32 %v527, 1.442695
        %v529 = vpow.pop %v528
        %v530 = vsel %vm521, %v529, 0.0
        %v531 = vsel %vm523, %v530, 0.0
        %532 = vadd.xlane.f32.xlu0 %v531
        %v533 = vpop.xlane.xlu0 %532
        %v534 = vrcp.pop %v533
        %v535 = vmul.f32 %v530, %v534
        %vm536 = vcmp.lt.s32.totalorder %v512, 21
        %v537 = vsel %vm536, %v518, %v535
        %538 = vst [vmem:[%s304] sm:$0x3] %v537
      $region56: #{attention_forward.1} parent=47 // pred_fallthru
        _
      %p539 = scmp.lt.s32.totalorder %s22, 0
      %s540 = scalar_select %p539, %s22, 0
      %s541 = smul.addr %s540, 2
      %s542 = scalar_lea.vmem %s7, %s541
      // Predicated region
      $region57: #{attention_forward.1} parent=47 // pred_check
        %p543 = pneg %p202
      $region58: #{attention_forward.1} parent=47 // pred_check_branch
        %545 = sbr.rel (%p543) target = $region60
      $region59: #{attention_forward.1} parent=47 // pred_region
        _
      $region60: #{attention_forward.1} parent=47 // pred_fallthru
        _
      // Predicated region
      $region61: #{attention_forward.1} parent=47 // pred_check
        %p546 = pneg %p202
      $region62: #{attention_forward.1} parent=47 // pred_check_branch
        %548 = sbr.rel (%p546) target = $region64
      $region63: #{attention_forward.1} parent=47 // pred_region
        %p549 = scmp.lt.s32.totalorder %s22, 0
        %s550 = scalar_select %p549, %s22, 0
        %s551 = smul.addr %s550, 2
        %s552 = scalar_lea.vmem %s7, %s551
      $region64: #{attention_forward.1} parent=47 // pred_fallthru
        _
    $region48: #{attention_forward.1} parent=5 // pred_fallthru
      _
    %p553 = scmp.le.s32.totalorder 2, %s13
    // Predicated region
    $region65: #{attention_forward.1} parent=5 // pred_check
      %p554 = pneg %p553
    $region66: #{attention_forward.1} parent=5 // pred_check_branch
      %556 = sbr.rel (%p554) target = $region68
    $region67: #{attention_forward.1} parent=5 // pred_region
      %s557 = ssub.s32 %s13, 2
    $region68: #{attention_forward.1} parent=5 // pred_fallthru
      _
  $region6: #{attention_forward.1} parent=0 // loop_footer
    %s17 = sadd.s32 1, %s13
  $region7: #{attention_forward.1} parent=0 // loop_footer_branch
    %12 = sbr.rel target = $region3
  $region8: #{attention_forward.1} parent=0 // loop_exit
    _

</llo_original>
